<compile_context>
chip_gen: v6e
topology: v6e:2x2x1
jax: 0.10.0
libtpu: 0.0.40
codegen_flags: <defaults>
</compile_context>

<pallas_src>
import functools
import warnings

import jax
import jax.numpy as jnp
from jax.experimental import pallas as pl
from jax.experimental.pallas import tpu as pltpu


LN_EPS = 1e-5                    # torch.nn.LayerNorm default
_VMEM_TILE_BUDGET = 8 << 20      # bytes for double-buffered (x + out) tiles; safe on
                                 # v5e/v6e (128 MiB VMEM) and v7x (32 MiB scoped default)
_MIN_PIPELINE_ROWS = 512         # above this many rows, keep >=2 row tiles per branch


def _round_up(x, m):
    return -(-x // m) * m


def _cdiv(a, b):
    return -(-a // b)


def _num_rows(shape):
    n = 1
    for s in shape:
        n *= s
    return n


def _fused_emb_kernel(x_ref, w1c_ref, w2_ref, vec_ref, mavg_ref, o_ref):
    """Fused Linear -> LayerNorm -> ReLU -> Linear for one (branch, row-tile).

    `pack` tokens are packed along the 128-lane axis; W1c/W2 are block-diagonal
    so one matmul performs `pack` independent per-token linears.  W1c is
    pre-centered on the host (LayerNorm mean folded in), so only three MXU
    matmuls remain.  Matmul operands are in compute dtype (bf16 by default)
    with f32 accumulation; LayerNorm arithmetic stays in f32.
    """
    x = x_ref[...]                                    # (tmw, PD), compute dtype
    vecs = vec_ref[...]                               # (4, PH) f32
    b1c, gamma, beta, b2 = vecs[0:1], vecs[1:2], vecs[2:3], vecs[3:4]

    # Linear 1 with the LayerNorm mean pre-folded: cent = x @ W1c + b1c.
    cent = jnp.dot(x, w1c_ref[...], preferred_element_type=jnp.float32) + b1c

    # Segmented biased variance per token (H-lane segments) via the block-
    # diagonal averaging matmul — stays lane-dense, no reshapes.
    # TODO(synk): on v5e, if a bundle dump still shows the vmatmul slot
    # saturating, move this reduction to the XLU (strided pltpu.roll tree).
    csq = (cent * cent).astype(mavg_ref.dtype)
    var = jnp.dot(csq, mavg_ref[...], preferred_element_type=jnp.float32)

    scale = jax.lax.rsqrt(var + LN_EPS) * gamma       # fold gamma into the scale
    hn = cent * scale + beta
    r = jnp.maximum(hn, 0.0)                          # ReLU

    # Linear 2 (block-diagonal), compute-dtype operands, f32 accumulation.
    o = jnp.dot(r.astype(w2_ref.dtype), w2_ref[...],
                preferred_element_type=jnp.float32) + b2
    o_ref[...] = o.astype(o_ref.dtype)


def _pack_branch_params(params, d_tok, pack, compute_dtype):
    """Pre-center W1, pad/tile params into the packed block-diagonal layout."""
    w1, b1, gamma, beta, w2, b2 = params
    f32 = jnp.float32
    w1 = w1.astype(f32)
    b1 = b1.astype(f32)

    # Fold the LayerNorm mean into Linear1:  cent = x @ W1c + b1c
    #   W1c[:, j] = W1[:, j] - mean_j' W1[:, j'],   b1c = b1 - mean(b1)
    w1c = w1 - jnp.mean(w1, axis=1, keepdims=True)
    b1c = b1 - jnp.mean(b1)

    d_in = w1.shape[0]
    w1c = jnp.pad(w1c, ((0, d_tok - d_in), (0, 0)))         # zero rows for padded x cols
    eye = jnp.eye(pack, dtype=f32)
    w1c_bd = jnp.kron(eye, w1c).astype(compute_dtype)        # (pack*d_tok, pack*H)
    w2_bd = jnp.kron(eye, w2.astype(f32)).astype(compute_dtype)  # (pack*H, pack*H)

    # Single (4, pack*H) f32 constant: [b1c, gamma, beta, b2] (one DMA, not four).
    vecs = jnp.stack([
        jnp.tile(b1c, pack),
        jnp.tile(gamma.astype(f32), pack),
        jnp.tile(beta.astype(f32), pack),
        jnp.tile(b2.astype(f32), pack),
    ])
    return w1c_bd, w2_bd, vecs


def _pack_input(x2, n_pad, d_tok, pack):
    """(N, D) -> zero-pad rows/cols -> contiguous view (n_pad//pack, pack*d_tok)."""
    n, d = x2.shape
    xp = jnp.pad(x2, ((0, n_pad - n), (0, d_tok - d)))
    return xp.reshape(n_pad // pack, pack * d_tok)


@functools.partial(jax.jit, static_argnames=("tm_target", "compute_dtype"))
def skeleton_emb(t_src, s_src, t_params, s_params, *, tm_target=8192,
                 compute_dtype=jnp.bfloat16):
    """Pallas equivalent of Skeleton_Emb.forward (both branches in one kernel)."""
    hidden = t_params[0].shape[1]
    assert s_params[0].shape[1] == hidden, "branches must share hidden_size"
    out_dtype = jnp.result_type(t_src.dtype, s_src.dtype)

    t_lead, s_lead = t_src.shape[:-1], s_src.shape[:-1]
    d_t, d_s = t_src.shape[-1], s_src.shape[-1]
    n_t, n_s = _num_rows(t_lead), _num_rows(s_lead)

    # Token packing along lanes: pack tokens per 128-lane row when H divides 128.
    pack = 128 // hidden if (128 % hidden == 0) else 1
    if (pack * hidden) % 128 != 0:
        warnings.warn(
            "Skeleton_Emb Pallas kernel: hidden_size=%d leaves the 128-lane axis "
            "partially filled (lane-sparse stores); expect reduced throughput."
            % hidden)
    d_tok = _round_up(max(d_t, d_s), 128 // pack) if pack > 1 else max(d_t, d_s)

    row_align = 8 * pack
    n_max = max(n_t, n_s, 1)

    # Row-tile selection:
    #  * even split of n_max -> padding waste is at most a few alignment rows,
    #  * >=2 tiles per branch for medium/large inputs (DMA/compute overlap, v7x),
    #  * capped so double-buffered (x + out) tiles stay within _VMEM_TILE_BUDGET
    #    (generation-safe: fits v7x's 32 MiB scoped VMEM with large headroom).
    n_steps = _cdiv(n_max, tm_target)
    if n_steps == 1 and n_max >= 2 * _MIN_PIPELINE_ROWS:
        n_steps = 2
    tm = _round_up(_cdiv(n_max, n_steps), row_align)
    bytes_per_token_row = (d_tok * jnp.dtype(compute_dtype).itemsize
                           + hidden * jnp.dtype(out_dtype).itemsize)
    tm_cap = _VMEM_TILE_BUDGET // (2 * bytes_per_token_row)
    tm_cap = max(row_align, (tm_cap // row_align) * row_align)
    if tm > tm_cap:
        tm = tm_cap
        n_steps = _cdiv(n_max, tm)
    n_pad = n_steps * tm

    tmw = tm // pack              # kernel row-tile in packed rows (multiple of 8)
    pd = pack * d_tok             # packed input width  (128 for the ref config)
    ph = pack * hidden            # packed output width (128 for the ref config)

    # Branch-stacked packed inputs (bf16 cast fused into the pad/reshape pass).
    x_all = jnp.stack([
        _pack_input(t_src.reshape(n_t, d_t).astype(compute_dtype), n_pad, d_tok, pack),
        _pack_input(s_src.reshape(n_s, d_s).astype(compute_dtype), n_pad, d_tok, pack),
    ])

    t_p = _pack_branch_params(t_params, d_tok, pack, compute_dtype)
    s_p = _pack_branch_params(s_params, d_tok, pack, compute_dtype)
    w1c_all, w2_all, vec_all = (jnp.stack([a, b]) for a, b in zip(t_p, s_p))

    # Block-diagonal segment-averaging matrix (shared by both branches).
    # 1/32 is a power of two -> exact in bf16 for the reference config.
    mavg = jnp.kron(jnp.eye(pack, dtype=jnp.float32),
                    jnp.full((hidden, hidden), 1.0 / hidden, jnp.float32)
                    ).astype(compute_dtype)

    grid = (2, n_pad // tm)       # branch axis outer so weights DMA once per branch

    out = pl.pallas_call(
        _fused_emb_kernel,
        out_shape=jax.ShapeDtypeStruct((2, n_pad // pack, ph), out_dtype),
        grid_spec=pltpu.PrefetchScalarGridSpec(
            num_scalar_prefetch=0,
            grid=grid,
            in_specs=[
                pl.BlockSpec((None, tmw, pd), lambda b, i: (b, i, 0)),   # x (packed)
                pl.BlockSpec((None, pd, ph), lambda b, i: (b, 0, 0)),    # W1c block-diag
                pl.BlockSpec((None, ph, ph), lambda b, i: (b, 0, 0)),    # W2 block-diag
                pl.BlockSpec((None, 4, ph), lambda b, i: (b, 0, 0)),     # [b1c,g,beta,b2]
                pl.BlockSpec((ph, ph), lambda b, i: (0, 0)),             # M_avg
            ],
            out_specs=pl.BlockSpec((None, tmw, ph), lambda b, i: (b, i, 0)),
        ),
        compiler_params=pltpu.CompilerParams(
            dimension_semantics=("parallel", "parallel")),
    )(x_all, w1c_all, w2_all, vec_all, mavg)

    t_out = out[0].reshape(n_pad, hidden)[:n_t].reshape(*t_lead, hidden).astype(t_src.dtype)
    s_out = out[1].reshape(n_pad, hidden)[:n_s].reshape(*s_lead, hidden).astype(s_src.dtype)
    return t_out, s_out


def init_branch_params(key, d_in, hidden, dtype=jnp.float32):
    """Deterministic synthetic parameters matching nn.Linear / nn.LayerNorm shapes."""
    k1, k2, k3, k4 = jax.random.split(key, 4)
    # PyTorch Linear stores weight as (out, in); we store (in, out) so the kernel
    # does x @ W directly (same math).
    w1 = (jax.random.normal(k1, (d_in, hidden), dtype) * (1.0 / jnp.sqrt(d_in))).astype(dtype)
    b1 = (jax.random.normal(k2, (hidden,), dtype) * 0.01).astype(dtype)
    gamma = jnp.ones((hidden,), dtype)
    beta = jnp.zeros((hidden,), dtype)
    w2 = (jax.random.normal(k3, (hidden, hidden), dtype) * (1.0 / jnp.sqrt(hidden))).astype(dtype)
    b2 = (jax.random.normal(k4, (hidden,), dtype) * 0.01).astype(dtype)
    return (w1, b1, gamma, beta, w2, b2)


def _reference_branch(x, params):
    """Pure-JAX f32 reference for correctness checking."""
    w1, b1, gamma, beta, w2, b2 = params
    h = x @ w1 + b1
    mean = h.mean(-1, keepdims=True)
    var = ((h - mean) ** 2).mean(-1, keepdims=True)
    hn = (h - mean) / jnp.sqrt(var + LN_EPS) * gamma + beta
    r = jnp.maximum(hn, 0.0)
    return r @ w2 + b2


if __name__ == "__main__":
    # Shapes consistent with the module's forward:
    # t_src: (batch, seq, t_input_size), s_src: (batch, seq, s_input_size)
    batch, seq = 2, 8
    t_input_size, s_input_size, hidden_size = 16, 24, 32

    key = jax.random.PRNGKey(0)
    k_t, k_s, k_tp, k_sp = jax.random.split(key, 4)

    t_src = jax.random.normal(k_t, (batch, seq, t_input_size), jnp.float32)
    s_src = jax.random.normal(k_s, (batch, seq, s_input_size), jnp.float32)

    t_params = init_branch_params(k_tp, t_input_size, hidden_size)
    s_params = init_branch_params(k_sp, s_input_size, hidden_size)

    t_ref = _reference_branch(t_src, t_params)
    s_ref = _reference_branch(s_src, s_params)

    # Exact-math path (f32 MXU operands): tight tolerance against the f32 reference.
    t32, s32 = skeleton_emb(t_src, s_src, t_params, s_params,
                            compute_dtype=jnp.float32)
    jax.block_until_ready((t32, s32))
    assert t32.shape == (batch, seq, hidden_size)
    assert s32.shape == (batch, seq, hidden_size)
    assert jnp.max(jnp.abs(t32 - t_ref)) < 1e-4
    assert jnp.max(jnp.abs(s32 - s_ref)) < 1e-4

    # Fast path (default: bf16 MXU operands, f32 accumulation / LayerNorm math).
    t_out, s_out = skeleton_emb(t_src, s_src, t_params, s_params)
    jax.block_until_ready((t_out, s_out))
    assert t_out.shape == (batch, seq, hidden_size)
    assert s_out.shape == (batch, seq, hidden_size)
    assert jnp.max(jnp.abs(t_out - t_ref)) < 8e-2   # bf16-operand tolerance
    assert jnp.max(jnp.abs(s_out - s_ref)) < 8e-2

    print("KERNEL_OK")
</pallas_src>

<mosaic_0001>
module attributes {stable_mosaic.version = 11 : i64} {
  func.func @_fused_emb_kernel(%arg0: i32, %arg1: i32, %arg2: memref<1x8x128xf32, #tpu.memory_space<vmem>>, %arg3: memref<1x128x128xf32, #tpu.memory_space<vmem>>, %arg4: memref<1x128x128xf32, #tpu.memory_space<vmem>>, %arg5: memref<1x4x128xf32, #tpu.memory_space<vmem>>, %arg6: memref<128x128xf32, #tpu.memory_space<vmem>>, %arg7: memref<1x8x128xf32, #tpu.memory_space<vmem>>) attributes {dimension_semantics = [#tpu.dimension_semantics<parallel>, #tpu.dimension_semantics<parallel>], iteration_bounds = array<i64: 2, 1>, scalar_prefetch = 0 : i64, scratch_operands = 0 : i64, tpu.core_type = #tpu.core_type<tc>, window_params = [{transform_indices = @transform_0, window_bounds = array<i64: 1, 8, 128>}, {transform_indices = @transform_1, window_bounds = array<i64: 1, 128, 128>}, {transform_indices = @transform_2, window_bounds = array<i64: 1, 128, 128>}, {transform_indices = @transform_3, window_bounds = array<i64: 1, 4, 128>}, {pipeline_mode = #tpu.pipeline_mode<synchronous>, transform_indices = @transform_4, window_bounds = array<i64: 128, 128>}, {transform_indices = @transform_5, window_bounds = array<i64: 1, 8, 128>}]} {
    %c0 = arith.constant 0 : index
    %c0_0 = arith.constant 0 : index
    %c0_1 = arith.constant 0 : index
    %0 = vector.load %arg2[%c0, %c0_0, %c0_1] : memref<1x8x128xf32, #tpu.memory_space<vmem>>, vector<1x8x128xf32>
    %1 = vector.shape_cast %0 : vector<1x8x128xf32> to vector<8x128xf32>
    %c0_2 = arith.constant 0 : index
    %c0_3 = arith.constant 0 : index
    %c0_4 = arith.constant 0 : index
    %2 = vector.load %arg5[%c0_2, %c0_3, %c0_4] : memref<1x4x128xf32, #tpu.memory_space<vmem>>, vector<1x4x128xf32>
    %3 = vector.shape_cast %2 : vector<1x4x128xf32> to vector<4x128xf32>
    %4 = vector.extract_strided_slice %3 {offsets = [0, 0], sizes = [1, 128], strides = [1, 1]} : vector<4x128xf32> to vector<1x128xf32>
    %5 = vector.extract_strided_slice %3 {offsets = [1, 0], sizes = [1, 128], strides = [1, 1]} : vector<4x128xf32> to vector<1x128xf32>
    %6 = vector.extract_strided_slice %3 {offsets = [2, 0], sizes = [1, 128], strides = [1, 1]} : vector<4x128xf32> to vector<1x128xf32>
    %7 = vector.extract_strided_slice %3 {offsets = [3, 0], sizes = [1, 128], strides = [1, 1]} : vector<4x128xf32> to vector<1x128xf32>
    %c0_5 = arith.constant 0 : index
    %c0_6 = arith.constant 0 : index
    %c0_7 = arith.constant 0 : index
    %8 = vector.load %arg3[%c0_5, %c0_6, %c0_7] : memref<1x128x128xf32, #tpu.memory_space<vmem>>, vector<1x128x128xf32>
    %9 = vector.shape_cast %8 : vector<1x128x128xf32> to vector<128x128xf32>
    %cst = arith.constant dense<0.000000e+00> : vector<8x128xf32>
    %10 = tpu.matmul %1, %9, %cst {dimension_numbers = #tpu.dot_dimension_numbers<[1], [0], [0], [1], [0, 0, 1, 1], [], []>} : vector<8x128xf32>, vector<128x128xf32>, vector<8x128xf32> -> vector<8x128xf32>
    %11 = vector.broadcast %4 : vector<1x128xf32> to vector<8x128xf32>
    %12 = arith.addf %10, %11 : vector<8x128xf32>
    %13 = arith.mulf %12, %12 : vector<8x128xf32>
    %c0_8 = arith.constant 0 : index
    %c0_9 = arith.constant 0 : index
    %14 = vector.load %arg6[%c0_8, %c0_9] : memref<128x128xf32, #tpu.memory_space<vmem>>, vector<128x128xf32>
    %cst_10 = arith.constant dense<0.000000e+00> : vector<8x128xf32>
    %15 = tpu.matmul %13, %14, %cst_10 {dimension_numbers = #tpu.dot_dimension_numbers<[1], [0], [0], [1], [0, 0, 1, 1], [], []>} : vector<8x128xf32>, vector<128x128xf32>, vector<8x128xf32> -> vector<8x128xf32>
    %cst_11 = arith.constant 9.99999974E-6 : f32
    %16 = vector.broadcast %cst_11 : f32 to vector<8x128xf32>
    %17 = arith.addf %15, %16 : vector<8x128xf32>
    %18 = math.rsqrt %17 : vector<8x128xf32>
    %19 = vector.broadcast %5 : vector<1x128xf32> to vector<8x128xf32>
    %20 = arith.mulf %18, %19 : vector<8x128xf32>
    %21 = arith.mulf %12, %20 : vector<8x128xf32>
    %22 = vector.broadcast %6 : vector<1x128xf32> to vector<8x128xf32>
    %23 = arith.addf %21, %22 : vector<8x128xf32>
    %cst_12 = arith.constant 0.000000e+00 : f32
    %24 = vector.broadcast %cst_12 : f32 to vector<8x128xf32>
    %25 = arith.maximumf %23, %24 : vector<8x128xf32>
    %c0_13 = arith.constant 0 : index
    %c0_14 = arith.constant 0 : index
    %c0_15 = arith.constant 0 : index
    %26 = vector.load %arg4[%c0_13, %c0_14, %c0_15] : memref<1x128x128xf32, #tpu.memory_space<vmem>>, vector<1x128x128xf32>
    %27 = vector.shape_cast %26 : vector<1x128x128xf32> to vector<128x128xf32>
    %cst_16 = arith.constant dense<0.000000e+00> : vector<8x128xf32>
    %28 = tpu.matmul %25, %27, %cst_16 {dimension_numbers = #tpu.dot_dimension_numbers<[1], [0], [0], [1], [0, 0, 1, 1], [], []>} : vector<8x128xf32>, vector<128x128xf32>, vector<8x128xf32> -> vector<8x128xf32>
    %29 = vector.broadcast %7 : vector<1x128xf32> to vector<8x128xf32>
    %30 = arith.addf %28, %29 : vector<8x128xf32>
    %c0_17 = arith.constant 0 : index
    %c0_18 = arith.constant 0 : index
    %c0_19 = arith.constant 0 : index
    %31 = vector.load %arg7[%c0_17, %c0_18, %c0_19] : memref<1x8x128xf32, #tpu.memory_space<vmem>>, vector<1x8x128xf32>
    %32 = vector.shape_cast %31 : vector<1x8x128xf32> to vector<8x128xf32>
    %33 = vector.shape_cast %30 : vector<8x128xf32> to vector<1x8x128xf32>
    tpu.vector_store %arg7[%c0_17, %c0_18, %c0_19], %33 {strides = array<i32>} : memref<1x8x128xf32, #tpu.memory_space<vmem>>, vector<1x8x128xf32>,
    return
  }
  func.func @transform_0(%arg0: i32, %arg1: i32) -> (i32, i32, i32) {
    %c0_i32 = arith.constant 0 : i32
    %c0_i32_0 = arith.constant 0 : i32
    return %arg0, %arg1, %c0_i32 : i32, i32, i32
  }
  func.func @transform_1(%arg0: i32, %arg1: i32) -> (i32, i32, i32) {
    %c0_i32 = arith.constant 0 : i32
    %c0_i32_0 = arith.constant 0 : i32
    %c0_i32_1 = arith.constant 0 : i32
    return %arg0, %c0_i32, %c0_i32_0 : i32, i32, i32
  }
  func.func @transform_2(%arg0: i32, %arg1: i32) -> (i32, i32, i32) {
    %c0_i32 = arith.constant 0 : i32
    %c0_i32_0 = arith.constant 0 : i32
    %c0_i32_1 = arith.constant 0 : i32
    return %arg0, %c0_i32, %c0_i32_0 : i32, i32, i32
  }
  func.func @transform_3(%arg0: i32, %arg1: i32) -> (i32, i32, i32) {
    %c0_i32 = arith.constant 0 : i32
    %c0_i32_0 = arith.constant 0 : i32
    %c0_i32_1 = arith.constant 0 : i32
    return %arg0, %c0_i32, %c0_i32_0 : i32, i32, i32
  }
  func.func @transform_4(%arg0: i32, %arg1: i32) -> (i32, i32) {
    %c0_i32 = arith.constant 0 : i32
    %c0_i32_0 = arith.constant 0 : i32
    %c0_i32_1 = arith.constant 0 : i32
    return %c0_i32, %c0_i32_0 : i32, i32
  }
  func.func @transform_5(%arg0: i32, %arg1: i32) -> (i32, i32, i32) {
    %c0_i32 = arith.constant 0 : i32
    %c0_i32_0 = arith.constant 0 : i32
    return %arg0, %arg1, %c0_i32 : i32, i32, i32
  }
}

</mosaic_0001>

<llo_original>
// kernel: tile.43
$region0: #{tile.43}
  #allocation0 [shape = 's32[1]{0}', space=sflag, size = 0x4, scoped, tag = 'scoped memory for tile.43']
  %s0 = inlined_call_operand.vmem [shape: f32[32], index: 0, kind: input, shape index: {}]
  %s1 = inlined_call_operand.vmem [shape: f32[4,32], index: 1, kind: output, shape index: {}]
  // Predicated region
  $region2: #{tile.43} parent=0 // pred_check
    _
  $region3: #{tile.43} parent=0 // pred_check_branch
    %3 = sbr.rel (0) target = $region5
  $region4: #{tile.43} parent=0 // pred_region
    _
  $region5: #{tile.43} parent=0 // pred_fallthru
    _
  %v4 = vld [vmem:[%s0] ss:$0 sm:$0xff]
  %5 = vst [vmem:[%s1] sm:$0xf] %v4

// kernel: tile.56
$region0: #{tile.56}
  %s0 = inlined_call_operand.vmem [shape: f32[4,32], index: 0, kind: input, shape index: {}]
  %s1 = inlined_call_operand.vmem [shape: f32[1,128], index: 1, kind: output, shape index: {}]
  $region1: #{tile.56} parent=0
    #allocation0 [shape = 'u8[4096]{0}', space=vmem, size = 0x1000, scoped, tag = 'scoped mem for output reshape']
    #allocation1 [shape = 'u8[4096]{0}', space=vmem, size = 0x1000, scoped, tag = 'scoped mem for input reshape']
    %s3 = sshll.u32 1, 4
    %s4 = ssub.s32 %s3, 1
    %v5 = vld [vmem:[%s0] sm:%s4]
    %6 = vst [vmem:[#allocation1] sm:%s4] %v5
    %v7 = vld [vmem:[#allocation1] sm:$0x1]
    %vm8 = vcmask 261120
    %9 = vst.msk [vmem:[#allocation0] sm:$0x1] %vm8, %v7
    %s10 = scalar_lea.vmem [#allocation1], 3
    %v11 = vld [vmem:[%s10] sm:$0x1]
    %12 = vrot.lane.b32.xlu0 %v11, 96
    %v13 = vpop.permute.xlu0 %12
    %vm14 = vcmask 1048320
    %15 = vst.msk [vmem:[#allocation0] sm:$0x1] %vm14, %v13
    %s16 = scalar_lea.vmem [#allocation1], 2
    %v17 = vld [vmem:[%s16] sm:$0x1]
    %18 = vrot.lane.b32.xlu0 %v17, 64
    %v19 = vpop.permute.xlu0 %18
    %vm20 = vcmask 785920
    %21 = vst.msk [vmem:[#allocation0] sm:$0x1] %vm20, %v19
    %s22 = scalar_lea.vmem [#allocation1], 1
    %v23 = vld [vmem:[%s22] sm:$0x1]
    %24 = vrot.lane.b32.xlu0 %v23, 32
    %v25 = vpop.permute.xlu0 %24
    %vm26 = vcmask 523520
    %27 = vst.msk [vmem:[#allocation0] sm:$0x1] %vm26, %v25
    %s29 = sshll.u32 1, 1
    %s30 = ssub.s32 %s29, 1
    %v32 = vld [vmem:[#allocation0] sm:%s30]
    %s33 = sshll.u32 1, 1
    %s34 = ssub.s32 %s33, 1
    %35 = vst [vmem:[%s1] sm:%s34] %v32

// kernel: skeleton_emb.1
$region0: #{skeleton_emb.1}
  #allocation0 [shape = 'u32[]', space=smem, size = 0x4, offset = 0x4, fixed_abs, tag = 'smem constant byte address 0x4 - core index']
  #allocation1 [shape = 'u32[144,128]{1,0:T(1,128)}', space=vmem, size = 0x12000, scoped, tag = 'internal scratch']
  %s0 = inlined_call_operand.vmem [shape: f32[2,8,128], index: 0, kind: input, shape index: {}]
  %s1 = inlined_call_operand.vmem [shape: f32[2,128,128], index: 1, kind: input, shape index: {}]
  %s2 = inlined_call_operand.vmem [shape: f32[2,128,128], index: 2, kind: input, shape index: {}]
  %s3 = inlined_call_operand.vmem [shape: f32[2,4,128], index: 3, kind: input, shape index: {}]
  %s4 = inlined_call_operand.vmem [shape: f32[128,128], index: 4, kind: input, shape index: {}]
  %s5 = inlined_call_operand.vmem [shape: f32[2,8,128], index: 5, kind: output, shape index: {}]
  %s6 = sld [smem:[#allocation0]]
  $region53: #{skeleton_emb.1} parent=0
    _
  %s8 = ssub.s32 1, %s6
  %s9 = scalar_select 0, %s8, %s6
  loop: start=0, step=1, limit=4
  $region2: #{skeleton_emb.1} parent=0 // loop_pre_header
    _
  $region3: #{skeleton_emb.1} parent=0 // loop_header
    %s11 = sphi 0, %s15
    %p12 = scmp.ge.s32.totalorder %s11, 4
    %s18 = sphi 0, %s30
    %s19 = sphi 0, %s26
    %s20 = sphi 0, %s18
    %s21 = sphi 0, %s19
    %s22 = sphi 0, %s20
    %s23 = sphi 0, %s21
    %s35 = sphi 0, %s37
    %s38 = sphi 0, %s35
    %s39 = sphi 0, %s38
    %s55 = sphi 0, %s39
    %s61 = sphi 0, %s63
    %s64 = sphi 0, %s61
    %s65 = sphi 0, %s64
    %s81 = sphi 0, %s65
    %s87 = sphi 0, %s89
    %s90 = sphi 0, %s87
    %s91 = sphi 0, %s90
    %s107 = sphi 0, %s91
    %s113 = sphi 0, %s115
    %s116 = sphi 0, %s113
    %s117 = sphi 0, %s116
    %s133 = sphi 0, %s117
    %s137 = sphi 0, %s137
    %s139 = sphi 0, %s137
    %s140 = sphi 0, %s139
    %s154 = sphi 0, %s140
    %s162 = sphi 0, %s164
    %s165 = sphi 0, %s162
    %s166 = sphi 0, %s165
    %s182 = sphi 0, %s166
  $region4: #{skeleton_emb.1} parent=0 // loop_header_branch
    %14 = sbr.rel (%p12) target = $region8
  $region5: #{skeleton_emb.1} parent=0 // loop_body
    %s16 = ssub.s32 %s11, 1
    %s17 = ssub.s32 %s11, 2
    %s24 = sadd.s32 1, %s19
    %p25 = scmp.ge.s32.totalorder %s24, 1
    %s26 = scalar_select %p25, 0, %s24
    %s27 = sadd.s32 1, %s18
    %s28 = scalar_select %p25, %s27, %s18
    %p29 = scmp.ge.s32.totalorder %s28, 2
    %s30 = scalar_select %p29, 0, %s28
    %s31 = ssub.s32 %s18, %s30
    %s32 = ssub.s32 %s19, %s26
    %s33 = sor.u32 %s31, %s32
    %p34 = scmp.eq.s32.totalorder %s33, 0
    %s36 = sadd.s32 %s35, 1
    %s37 = scalar_select %p34, %s35, %s36
    %p40 = pneg %p34
    %p41 = scmp.eq.s32.totalorder %s11, 1
    %p42 = por %p40, %p41
    %p43 = scmp.ne.s32.totalorder %s35, %s38
    %p44 = scmp.eq.s32.totalorder %s11, 0
    %p45 = por %p43, %p44
    %p46 = scmp.ne.s32.totalorder %s35, %s38
    %p47 = scmp.eq.s32.totalorder %s16, 1
    %p48 = por %p46, %p47
    %p49 = scmp.ne.s32.totalorder %s38, %s39
    %p50 = scmp.eq.s32.totalorder %s16, 0
    %p51 = por %p49, %p50
    %p52 = scmp.ne.s32.totalorder %s38, %s39
    %p53 = scmp.eq.s32.totalorder %s17, 1
    %p54 = por %p52, %p53
    %p56 = scmp.ne.s32.totalorder %s39, %s55
    %p57 = scmp.eq.s32.totalorder %s17, 0
    %p58 = por %p56, %p57
    %s59 = ssub.s32 %s18, %s30
    %p60 = scmp.eq.s32.totalorder %s59, 0
    %s62 = sadd.s32 %s61, 1
    %s63 = scalar_select %p60, %s61, %s62
    %p66 = pneg %p60
    %p67 = scmp.eq.s32.totalorder %s11, 1
    %p68 = por %p66, %p67
    %p69 = scmp.ne.s32.totalorder %s61, %s64
    %p70 = scmp.eq.s32.totalorder %s11, 0
    %p71 = por %p69, %p70
    %p72 = scmp.ne.s32.totalorder %s61, %s64
    %p73 = scmp.eq.s32.totalorder %s16, 1
    %p74 = por %p72, %p73
    %p75 = scmp.ne.s32.totalorder %s64, %s65
    %p76 = scmp.eq.s32.totalorder %s16, 0
    %p77 = por %p75, %p76
    %p78 = scmp.ne.s32.totalorder %s64, %s65
    %p79 = scmp.eq.s32.totalorder %s17, 1
    %p80 = por %p78, %p79
    %p82 = scmp.ne.s32.totalorder %s65, %s81
    %p83 = scmp.eq.s32.totalorder %s17, 0
    %p84 = por %p82, %p83
    %s85 = ssub.s32 %s18, %s30
    %p86 = scmp.eq.s32.totalorder %s85, 0
    %s88 = sadd.s32 %s87, 1
    %s89 = scalar_select %p86, %s87, %s88
    %p92 = pneg %p86
    %p93 = scmp.eq.s32.totalorder %s11, 1
    %p94 = por %p92, %p93
    %p95 = scmp.ne.s32.totalorder %s87, %s90
    %p96 = scmp.eq.s32.totalorder %s11, 0
    %p97 = por %p95, %p96
    %p98 = scmp.ne.s32.totalorder %s87, %s90
    %p99 = scmp.eq.s32.totalorder %s16, 1
    %p100 = por %p98, %p99
    %p101 = scmp.ne.s32.totalorder %s90, %s91
    %p102 = scmp.eq.s32.totalorder %s16, 0
    %p103 = por %p101, %p102
    %p104 = scmp.ne.s32.totalorder %s90, %s91
    %p105 = scmp.eq.s32.totalorder %s17, 1
    %p106 = por %p104, %p105
    %p108 = scmp.ne.s32.totalorder %s91, %s107
    %p109 = scmp.eq.s32.totalorder %s17, 0
    %p110 = por %p108, %p109
    %s111 = ssub.s32 %s18, %s30
    %p112 = scmp.eq.s32.totalorder %s111, 0
    %s114 = sadd.s32 %s113, 1
    %s115 = scalar_select %p112, %s113, %s114
    %p118 = pneg %p112
    %p119 = scmp.eq.s32.totalorder %s11, 1
    %p120 = por %p118, %p119
    %p121 = scmp.ne.s32.totalorder %s113, %s116
    %p122 = scmp.eq.s32.totalorder %s11, 0
    %p123 = por %p121, %p122
    %p124 = scmp.ne.s32.totalorder %s113, %s116
    %p125 = scmp.eq.s32.totalorder %s16, 1
    %p126 = por %p124, %p125
    %p127 = scmp.ne.s32.totalorder %s116, %s117
    %p128 = scmp.eq.s32.totalorder %s16, 0
    %p129 = por %p127, %p128
    %p130 = scmp.ne.s32.totalorder %s116, %s117
    %p131 = scmp.eq.s32.totalorder %s17, 1
    %p132 = por %p130, %p131
    %p134 = scmp.ne.s32.totalorder %s117, %s133
    %p135 = scmp.eq.s32.totalorder %s17, 0
    %p136 = por %p134, %p135
    %s138 = sadd.s32 %s137, 1
    %p141 = scmp.eq.s32.totalorder %s11, 1
    %p142 = scmp.ne.s32.totalorder %s137, %s139
    %p143 = scmp.eq.s32.totalorder %s11, 0
    %p144 = por %p142, %p143
    %p145 = scmp.ne.s32.totalorder %s137, %s139
    %p146 = scmp.eq.s32.totalorder %s16, 1
    %p147 = por %p145, %p146
    %p148 = scmp.ne.s32.totalorder %s139, %s140
    %p149 = scmp.eq.s32.totalorder %s16, 0
    %p150 = por %p148, %p149
    %p151 = scmp.ne.s32.totalorder %s139, %s140
    %p152 = scmp.eq.s32.totalorder %s17, 1
    %p153 = por %p151, %p152
    %p155 = scmp.ne.s32.totalorder %s140, %s154
    %p156 = scmp.eq.s32.totalorder %s17, 0
    %p157 = por %p155, %p156
    %s158 = ssub.s32 %s18, %s30
    %s159 = ssub.s32 %s19, %s26
    %s160 = sor.u32 %s158, %s159
    %p161 = scmp.eq.s32.totalorder %s160, 0
    %s163 = sadd.s32 %s162, 1
    %s164 = scalar_select %p161, %s162, %s163
    %p167 = pneg %p161
    %p168 = scmp.eq.s32.totalorder %s11, 1
    %p169 = por %p167, %p168
    %p170 = scmp.ne.s32.totalorder %s162, %s165
    %p171 = scmp.eq.s32.totalorder %s11, 0
    %p172 = por %p170, %p171
    %p173 = scmp.ne.s32.totalorder %s162, %s165
    %p174 = scmp.eq.s32.totalorder %s16, 1
    %p175 = por %p173, %p174
    %p176 = scmp.ne.s32.totalorder %s165, %s166
    %p177 = scmp.eq.s32.totalorder %s16, 0
    %p178 = por %p176, %p177
    %p179 = scmp.ne.s32.totalorder %s165, %s166
    %p180 = scmp.eq.s32.totalorder %s17, 1
    %p181 = por %p179, %p180
    %p183 = scmp.ne.s32.totalorder %s166, %s182
    %p184 = scmp.eq.s32.totalorder %s17, 0
    %p185 = por %p183, %p184
    %p186 = scmp.le.s32.totalorder 1, %s11
    %p187 = scmp.lt.s32.totalorder %s11, 3
    %p188 = pnand %p186, %p187
    %p189 = pneg %p188
    // Predicated region
    $region9: #{skeleton_emb.1} parent=5 // pred_check
      _
    $region10: #{skeleton_emb.1} parent=5 // pred_check_branch
      %191 = sbr.rel (%p188) target = $region12
    $region11: #{skeleton_emb.1} parent=5 // pred_region
      %s192 = ssub.s32 %s11, 1
      // Predicated region
      $region13: #{skeleton_emb.1} parent=11 // pred_check
        %p193 = pneg %p150
      $region14: #{skeleton_emb.1} parent=11 // pred_check_branch
        %195 = sbr.rel (%p193) target = $region16
      $region15: #{skeleton_emb.1} parent=11 // pred_region
        _
      $region16: #{skeleton_emb.1} parent=11 // pred_fallthru
        _
    $region12: #{skeleton_emb.1} parent=5 // pred_fallthru
      _
    %p196 = scmp.lt.s32.totalorder %s11, 2
    // Predicated region
    $region17: #{skeleton_emb.1} parent=5 // pred_check
      %p197 = pneg %p196
    $region18: #{skeleton_emb.1} parent=5 // pred_check_branch
      %199 = sbr.rel (%p197) target = $region20
    $region19: #{skeleton_emb.1} parent=5 // pred_region
      // Predicated region
      $region21: #{skeleton_emb.1} parent=19 // pred_check
        %p200 = pneg %p45
      $region22: #{skeleton_emb.1} parent=19 // pred_check_branch
        %202 = sbr.rel (%p200) target = $region24
      $region23: #{skeleton_emb.1} parent=19 // pred_region
        %p203 = scmp.lt.s32.totalorder %s18, 1
        %s204 = scalar_select %p203, %s18, 1
        %p205 = scmp.lt.s32.totalorder %s19, 0
        %s206 = scalar_select %p205, %s19, 0
        %s207 = sadd.s32 %s206, %s204
        %s208 = smul.addr %s207, 8
        %s209 = scalar_lea.vmem %s0, %s208
      $region24: #{skeleton_emb.1} parent=19 // pred_fallthru
        _
      // Predicated region
      $region25: #{skeleton_emb.1} parent=19 // pred_check
        %p210 = pneg %p71
      $region26: #{skeleton_emb.1} parent=19 // pred_check_branch
        %212 = sbr.rel (%p210) target = $region28
      $region27: #{skeleton_emb.1} parent=19 // pred_region
        %p213 = scmp.lt.s32.totalorder %s18, 1
        %s214 = scalar_select %p213, %s18, 1
        %s215 = smul.addr %s214, 16
        %s216 = smul.addr %s215, 8
        %s217 = scalar_lea.vmem %s1, %s216
      $region28: #{skeleton_emb.1} parent=19 // pred_fallthru
        _
      // Predicated region
      $region29: #{skeleton_emb.1} parent=19 // pred_check
        %p218 = pneg %p97
      $region30: #{skeleton_emb.1} parent=19 // pred_check_branch
        %220 = sbr.rel (%p218) target = $region32
      $region31: #{skeleton_emb.1} parent=19 // pred_region
        %p221 = scmp.lt.s32.totalorder %s18, 1
        %s222 = scalar_select %p221, %s18, 1
        %s223 = smul.addr %s222, 16
        %s224 = smul.addr %s223, 8
        %s225 = scalar_lea.vmem %s2, %s224
      $region32: #{skeleton_emb.1} parent=19 // pred_fallthru
        _
      // Predicated region
      $region33: #{skeleton_emb.1} parent=19 // pred_check
        %p226 = pneg %p123
      $region34: #{skeleton_emb.1} parent=19 // pred_check_branch
        %228 = sbr.rel (%p226) target = $region36
      $region35: #{skeleton_emb.1} parent=19 // pred_region
        %p229 = scmp.lt.s32.totalorder %s18, 1
        %s230 = scalar_select %p229, %s18, 1
        %s231 = smul.addr %s230, 4
        %s232 = scalar_lea.vmem %s3, %s231
      $region36: #{skeleton_emb.1} parent=19 // pred_fallthru
        _
    $region20: #{skeleton_emb.1} parent=5 // pred_fallthru
      _
    %p233 = scmp.le.s32.totalorder 1, %s11
    %p234 = scmp.lt.s32.totalorder %s11, 3
    %p235 = pnand %p233, %p234
    %p236 = pneg %p235
    // Predicated region
    $region37: #{skeleton_emb.1} parent=5 // pred_check
      _
    $region38: #{skeleton_emb.1} parent=5 // pred_check_branch
      %238 = sbr.rel (%p235) target = $region40
    $region39: #{skeleton_emb.1} parent=5 // pred_region
      %s239 = ssub.s32 %s11, 1
      %p240 = scmp.lt.s32.totalorder %s20, 1
      %s241 = scalar_select %p240, %s20, 1
      %p242 = scmp.lt.s32.totalorder %s21, 0
      %s243 = scalar_select %p242, %s21, 0
      %s244 = sadd.s32 %s243, %s241
      %s245 = smul.addr %s244, 8
      %s246 = scalar_lea.vmem %s0, %s245
      %p247 = pneg %p51
      %p248 = pneg %p48
      %p249 = scmp.lt.s32.totalorder %s20, 1
      %s250 = scalar_select %p249, %s20, 1
      %s251 = smul.addr %s250, 16
      %s252 = smul.addr %s251, 8
      %s253 = scalar_lea.vmem %s1, %s252
      %p254 = pneg %p77
      %p255 = pneg %p74
      %p256 = scmp.lt.s32.totalorder %s20, 1
      %s257 = scalar_select %p256, %s20, 1
      %s258 = smul.addr %s257, 16
      %s259 = smul.addr %s258, 8
      %s260 = scalar_lea.vmem %s2, %s259
      %p261 = pneg %p103
      %p262 = pneg %p100
      %p263 = scmp.lt.s32.totalorder %s20, 1
      %s264 = scalar_select %p263, %s20, 1
      %s265 = smul.addr %s264, 4
      %s266 = scalar_lea.vmem %s3, %s265
      %p267 = pneg %p129
      %p268 = pneg %p126
      %p269 = pneg %p150
      %p270 = pneg %p147
      %p271 = pneg %p178
      %p272 = pneg %p175
      %p273 = scmp.lt.s32.totalorder %s20, 1
      %s274 = scalar_select %p273, %s20, 1
      %p275 = scmp.lt.s32.totalorder %s21, 0
      %s276 = scalar_select %p275, %s21, 0
      %s277 = sadd.s32 %s276, %s274
      %s278 = smul.addr %s277, 8
      %s279 = scalar_lea.vmem %s5, %s278
      %p280 = scmp.lt.s32.totalorder %s20, 1
      %s281 = scalar_select %p280, %s20, 1
      %p282 = scmp.lt.s32.totalorder %s21, 0
      %s283 = scalar_select %p282, %s21, 0
      %s284 = sadd.s32 %s283, %s281
      %s285 = smul.addr %s284, 8
      %s286 = scalar_lea.vmem %s0, %s285
      %p287 = scmp.lt.s32.totalorder %s20, 1
      %s288 = scalar_select %p287, %s20, 1
      %s289 = smul.addr %s288, 16
      %s290 = smul.addr %s289, 8
      %s291 = scalar_lea.vmem %s1, %s290
      %p292 = scmp.lt.s32.totalorder %s20, 1
      %s293 = scalar_select %p292, %s20, 1
      %s294 = smul.addr %s293, 16
      %s295 = smul.addr %s294, 8
      %s296 = scalar_lea.vmem %s2, %s295
      %p297 = scmp.lt.s32.totalorder %s20, 1
      %s298 = scalar_select %p297, %s20, 1
      %s299 = smul.addr %s298, 4
      %s300 = scalar_lea.vmem %s3, %s299
      %p301 = scmp.lt.s32.totalorder %s20, 1
      %s302 = scalar_select %p301, %s20, 1
      %p303 = scmp.lt.s32.totalorder %s21, 0
      %s304 = scalar_select %p303, %s21, 0
      %s305 = sadd.s32 %s304, %s302
      %s306 = smul.addr %s305, 8
      %s307 = scalar_lea.vmem %s5, %s306
      %v308 = vld [vmem:[%s286] sm:$0xff]
      %v309 = vld [vmem:[%s300] sm:$0xf]
      %v310 = vld [vmem:[%s291] sm:$0xff]
      %v311 = vld [vmem:[%s291 + $0x8] sm:$0xff]
      %v312 = vld [vmem:[%s291 + $0x10] sm:$0xff]
      %v313 = vld [vmem:[%s291 + $0x18] sm:$0xff]
      %v314 = vld [vmem:[%s291 + $0x20] sm:$0xff]
      %v315 = vld [vmem:[%s291 + $0x28] sm:$0xff]
      %v316 = vld [vmem:[%s291 + $0x30] sm:$0xff]
      %v317 = vld [vmem:[%s291 + $0x38] sm:$0xff]
      %v318 = vld [vmem:[%s291 + $0x40] sm:$0xff]
      %v319 = vld [vmem:[%s291 + $0x48] sm:$0xff]
      %v320 = vld [vmem:[%s291 + $0x50] sm:$0xff]
      %v321 = vld [vmem:[%s291 + $0x58] sm:$0xff]
      %v322 = vld [vmem:[%s291 + $0x60] sm:$0xff]
      %v323 = vld [vmem:[%s291 + $0x68] sm:$0xff]
      %v324 = vld [vmem:[%s291 + $0x70] sm:$0xff]
      %v325 = vld [vmem:[%s291 + $0x78] sm:$0xff]
      %v326 = vlaneseq
      %v327 = vshrl.u32 %v326, 7
      %v328 = vsub.s32 0, %v327
      %v329 = vrot.slane %v309, %v328
      %330 = vmatprep.subr.mxu0 0.0
      %331 = vmatpush1.msra.mxu0 %v325
      %332 = vmatprep.subr.mxu0 0.0
      %333 = vmatpush1.msra.mxu0 %v324
      %334 = vmatprep.subr.mxu0 0.0
      %335 = vmatpush1.msra.mxu0 %v323
      %336 = vmatprep.subr.mxu0 0.0
      %337 = vmatpush1.msra.mxu0 %v322
      %338 = vmatprep.subr.mxu0 0.0
      %339 = vmatpush1.msra.mxu0 %v321
      %340 = vmatprep.subr.mxu0 0.0
      %341 = vmatpush1.msra.mxu0 %v320
      %342 = vmatprep.subr.mxu0 0.0
      %343 = vmatpush1.msra.mxu0 %v319
      %344 = vmatprep.subr.mxu0 0.0
      %345 = vmatpush1.msra.mxu0 %v318
      %346 = vmatprep.subr.mxu0 0.0
      %347 = vmatpush1.msra.mxu0 %v317
      %348 = vmatprep.subr.mxu0 0.0
      %349 = vmatpush1.msra.mxu0 %v316
      %350 = vmatprep.subr.mxu0 0.0
      %351 = vmatpush1.msra.mxu0 %v315
      %352 = vmatprep.subr.mxu0 0.0
      %353 = vmatpush1.msra.mxu0 %v314
      %354 = vmatprep.subr.mxu0 0.0
      %355 = vmatpush1.msra.mxu0 %v313
      %356 = vmatprep.subr.mxu0 0.0
      %357 = vmatpush1.msra.mxu0 %v312
      %358 = vmatprep.subr.mxu0 0.0
      %359 = vmatpush1.msra.mxu0 %v311
      %360 = vmatprep.subr.mxu0 0.0
      %361 = vmatpush1.msra.mxu0 %v310
      %362 = vmatprep.subr.mxu0 0.0
      %363 = vmatpush2.msra.mxu0 0.0
      %364 = vmatprep.subr.mxu0 0.0
      %365 = vmatpush2.msra.mxu0 0.0
      %366 = vmatprep.subr.mxu0 0.0
      %367 = vmatpush2.msra.mxu0 0.0
      %368 = vmatprep.subr.mxu0 0.0
      %369 = vmatpush2.msra.mxu0 0.0
      %370 = vmatprep.subr.mxu0 0.0
      %371 = vmatpush2.msra.mxu0 0.0
      %372 = vmatprep.subr.mxu0 0.0
      %373 = vmatpush2.msra.mxu0 0.0
      %374 = vmatprep.subr.mxu0 0.0
      %375 = vmatpush2.msra.mxu0 0.0
      %376 = vmatprep.subr.mxu0 0.0
      %377 = vmatpush2.msra.mxu0 0.0
      %378 = vmatprep.subr.mxu0 0.0
      %379 = vmatpush2.msra.mxu0 0.0
      %380 = vmatprep.subr.mxu0 0.0
      %381 = vmatpush2.msra.mxu0 0.0
      %382 = vmatprep.subr.mxu0 0.0
      %383 = vmatpush2.msra.mxu0 0.0
      %384 = vmatprep.subr.mxu0 0.0
      %385 = vmatpush2.msra.mxu0 0.0
      %386 = vmatprep.subr.mxu0 0.0
      %387 = vmatpush2.msra.mxu0 0.0
      %388 = vmatprep.subr.mxu0 0.0
      %389 = vmatpush2.msra.mxu0 0.0
      %390 = vmatprep.subr.mxu0 0.0
      %391 = vmatpush2.msra.mxu0 0.0
      %392 = vmatprep.subr.mxu0 0.0
      %393 = vmatpush2.msra.mxu0 0.0
      %394 = vmatprep.mubr.f32.mxu0 0.0
      %395 = vmatmul.mubr.f32.gmra.mxu0 %v308
      %v396 = vpop.f32.mrf.mxu0
      %v397 = vadd.f32 %v329, %v396
      %v398 = vpop.f32.mrf.mxu0
      %399 = vdwg.mxu0
      %v400 = vmul.f32 %v397, %v397
      %v401 = vld [vmem:[%s4] sm:$0xff]
      %v402 = vld [vmem:[%s4 + $0x8] sm:$0xff]
      %v403 = vld [vmem:[%s4 + $0x10] sm:$0xff]
      %v404 = vld [vmem:[%s4 + $0x18] sm:$0xff]
      %v405 = vld [vmem:[%s4 + $0x20] sm:$0xff]
      %v406 = vld [vmem:[%s4 + $0x28] sm:$0xff]
      %v407 = vld [vmem:[%s4 + $0x30] sm:$0xff]
      %v408 = vld [vmem:[%s4 + $0x38] sm:$0xff]
      %v409 = vld [vmem:[%s4 + $0x40] sm:$0xff]
      %v410 = vld [vmem:[%s4 + $0x48] sm:$0xff]
      %v411 = vld [vmem:[%s4 + $0x50] sm:$0xff]
      %v412 = vld [vmem:[%s4 + $0x58] sm:$0xff]
      %v413 = vld [vmem:[%s4 + $0x60] sm:$0xff]
      %v414 = vld [vmem:[%s4 + $0x68] sm:$0xff]
      %v415 = vld [vmem:[%s4 + $0x70] sm:$0xff]
      %v416 = vld [vmem:[%s4 + $0x78] sm:$0xff]
      %417 = vmatprep.subr.mxu0 0.0
      %418 = vmatpush1.msra.mxu0 %v416
      %419 = vmatprep.subr.mxu0 0.0
      %420 = vmatpush1.msra.mxu0 %v415
      %421 = vmatprep.subr.mxu0 0.0
      %422 = vmatpush1.msra.mxu0 %v414
      %423 = vmatprep.subr.mxu0 0.0
      %424 = vmatpush1.msra.mxu0 %v413
      %425 = vmatprep.subr.mxu0 0.0
      %426 = vmatpush1.msra.mxu0 %v412
      %427 = vmatprep.subr.mxu0 0.0
      %428 = vmatpush1.msra.mxu0 %v411
      %429 = vmatprep.subr.mxu0 0.0
      %430 = vmatpush1.msra.mxu0 %v410
      %431 = vmatprep.subr.mxu0 0.0
      %432 = vmatpush1.msra.mxu0 %v409
      %433 = vmatprep.subr.mxu0 0.0
      %434 = vmatpush1.msra.mxu0 %v408
      %435 = vmatprep.subr.mxu0 0.0
      %436 = vmatpush1.msra.mxu0 %v407
      %437 = vmatprep.subr.mxu0 0.0
      %438 = vmatpush1.msra.mxu0 %v406
      %439 = vmatprep.subr.mxu0 0.0
      %440 = vmatpush1.msra.mxu0 %v405
      %441 = vmatprep.subr.mxu0 0.0
      %442 = vmatpush1.msra.mxu0 %v404
      %443 = vmatprep.subr.mxu0 0.0
      %444 = vmatpush1.msra.mxu0 %v403
      %445 = vmatprep.subr.mxu0 0.0
      %446 = vmatpush1.msra.mxu0 %v402
      %447 = vmatprep.subr.mxu0 0.0
      %448 = vmatpush1.msra.mxu0 %v401
      %449 = vmatprep.subr.mxu0 0.0
      %450 = vmatpush2.msra.mxu0 0.0
      %451 = vmatprep.subr.mxu0 0.0
      %452 = vmatpush2.msra.mxu0 0.0
      %453 = vmatprep.subr.mxu0 0.0
      %454 = vmatpush2.msra.mxu0 0.0
      %455 = vmatprep.subr.mxu0 0.0
      %456 = vmatpush2.msra.mxu0 0.0
      %457 = vmatprep.subr.mxu0 0.0
      %458 = vmatpush2.msra.mxu0 0.0
      %459 = vmatprep.subr.mxu0 0.0
      %460 = vmatpush2.msra.mxu0 0.0
      %461 = vmatprep.subr.mxu0 0.0
      %462 = vmatpush2.msra.mxu0 0.0
      %463 = vmatprep.subr.mxu0 0.0
      %464 = vmatpush2.msra.mxu0 0.0
      %465 = vmatprep.subr.mxu0 0.0
      %466 = vmatpush2.msra.mxu0 0.0
      %467 = vmatprep.subr.mxu0 0.0
      %468 = vmatpush2.msra.mxu0 0.0
      %469 = vmatprep.subr.mxu0 0.0
      %470 = vmatpush2.msra.mxu0 0.0
      %471 = vmatprep.subr.mxu0 0.0
      %472 = vmatpush2.msra.mxu0 0.0
      %473 = vmatprep.subr.mxu0 0.0
      %474 = vmatpush2.msra.mxu0 0.0
      %475 = vmatprep.subr.mxu0 0.0
      %476 = vmatpush2.msra.mxu0 0.0
      %477 = vmatprep.subr.mxu0 0.0
      %478 = vmatpush2.msra.mxu0 0.0
      %479 = vmatprep.subr.mxu0 0.0
      %480 = vmatpush2.msra.mxu0 0.0
      %481 = vmatprep.mubr.f32.mxu0 0.0
      %482 = vmatmul.mubr.f32.gmra.mxu0 %v400
      %v483 = vpop.f32.mrf.mxu0
      %v484 = vadd.f32 1e-05, %v483
      %v485 = vpop.f32.mrf.mxu0
      %486 = vdwg.mxu0
      %v487 = vrsqrt.pop %v484
      %v488 = vlaneseq
      %v489 = vshrl.u32 %v488, 7
      %v490 = vsub.s32 1, %v489
      %v491 = vrot.slane %v309, %v490
      %v492 = vmul.f32 %v487, %v491
      %v493 = vmul.f32 %v397, %v492
      %v494 = vlaneseq
      %v495 = vshrl.u32 %v494, 7
      %v496 = vsub.s32 2, %v495
      %v497 = vrot.slane %v309, %v496
      %v498 = vadd.f32 %v493, %v497
      %v499 = vmax.f32 %v498, 0.0
      %v500 = vld [vmem:[%s296] sm:$0xff]
      %v501 = vld [vmem:[%s296 + $0x8] sm:$0xff]
      %v502 = vld [vmem:[%s296 + $0x10] sm:$0xff]
      %v503 = vld [vmem:[%s296 + $0x18] sm:$0xff]
      %v504 = vld [vmem:[%s296 + $0x20] sm:$0xff]
      %v505 = vld [vmem:[%s296 + $0x28] sm:$0xff]
      %v506 = vld [vmem:[%s296 + $0x30] sm:$0xff]
      %v507 = vld [vmem:[%s296 + $0x38] sm:$0xff]
      %v508 = vld [vmem:[%s296 + $0x40] sm:$0xff]
      %v509 = vld [vmem:[%s296 + $0x48] sm:$0xff]
      %v510 = vld [vmem:[%s296 + $0x50] sm:$0xff]
      %v511 = vld [vmem:[%s296 + $0x58] sm:$0xff]
      %v512 = vld [vmem:[%s296 + $0x60] sm:$0xff]
      %v513 = vld [vmem:[%s296 + $0x68] sm:$0xff]
      %v514 = vld [vmem:[%s296 + $0x70] sm:$0xff]
      %v515 = vld [vmem:[%s296 + $0x78] sm:$0xff]
      %v516 = vlaneseq
      %v517 = vshrl.u32 %v516, 7
      %v518 = vsub.s32 3, %v517
      %v519 = vrot.slane %v309, %v518
      %520 = vmatprep.subr.mxu0 0.0
      %521 = vmatpush1.msra.mxu0 %v515
      %522 = vmatprep.subr.mxu0 0.0
      %523 = vmatpush1.msra.mxu0 %v514
      %524 = vmatprep.subr.mxu0 0.0
      %525 = vmatpush1.msra.mxu0 %v513
      %526 = vmatprep.subr.mxu0 0.0
      %527 = vmatpush1.msra.mxu0 %v512
      %528 = vmatprep.subr.mxu0 0.0
      %529 = vmatpush1.msra.mxu0 %v511
      %530 = vmatprep.subr.mxu0 0.0
      %531 = vmatpush1.msra.mxu0 %v510
      %532 = vmatprep.subr.mxu0 0.0
      %533 = vmatpush1.msra.mxu0 %v509
      %534 = vmatprep.subr.mxu0 0.0
      %535 = vmatpush1.msra.mxu0 %v508
      %536 = vmatprep.subr.mxu0 0.0
      %537 = vmatpush1.msra.mxu0 %v507
      %538 = vmatprep.subr.mxu0 0.0
      %539 = vmatpush1.msra.mxu0 %v506
      %540 = vmatprep.subr.mxu0 0.0
      %541 = vmatpush1.msra.mxu0 %v505
      %542 = vmatprep.subr.mxu0 0.0
      %543 = vmatpush1.msra.mxu0 %v504
      %544 = vmatprep.subr.mxu0 0.0
      %545 = vmatpush1.msra.mxu0 %v503
      %546 = vmatprep.subr.mxu0 0.0
      %547 = vmatpush1.msra.mxu0 %v502
      %548 = vmatprep.subr.mxu0 0.0
      %549 = vmatpush1.msra.mxu0 %v501
      %550 = vmatprep.subr.mxu0 0.0
      %551 = vmatpush1.msra.mxu0 %v500
      %552 = vmatprep.subr.mxu0 0.0
      %553 = vmatpush2.msra.mxu0 0.0
      %554 = vmatprep.subr.mxu0 0.0
      %555 = vmatpush2.msra.mxu0 0.0
      %556 = vmatprep.subr.mxu0 0.0
      %557 = vmatpush2.msra.mxu0 0.0
      %558 = vmatprep.subr.mxu0 0.0
      %559 = vmatpush2.msra.mxu0 0.0
      %560 = vmatprep.subr.mxu0 0.0
      %561 = vmatpush2.msra.mxu0 0.0
      %562 = vmatprep.subr.mxu0 0.0
      %563 = vmatpush2.msra.mxu0 0.0
      %564 = vmatprep.subr.mxu0 0.0
      %565 = vmatpush2.msra.mxu0 0.0
      %566 = vmatprep.subr.mxu0 0.0
      %567 = vmatpush2.msra.mxu0 0.0
      %568 = vmatprep.subr.mxu0 0.0
      %569 = vmatpush2.msra.mxu0 0.0
      %570 = vmatprep.subr.mxu0 0.0
      %571 = vmatpush2.msra.mxu0 0.0
      %572 = vmatprep.subr.mxu0 0.0
      %573 = vmatpush2.msra.mxu0 0.0
      %574 = vmatprep.subr.mxu0 0.0
      %575 = vmatpush2.msra.mxu0 0.0
      %576 = vmatprep.subr.mxu0 0.0
      %577 = vmatpush2.msra.mxu0 0.0
      %578 = vmatprep.subr.mxu0 0.0
      %579 = vmatpush2.msra.mxu0 0.0
      %580 = vmatprep.subr.mxu0 0.0
      %581 = vmatpush2.msra.mxu0 0.0
      %582 = vmatprep.subr.mxu0 0.0
      %583 = vmatpush2.msra.mxu0 0.0
      %584 = vmatprep.mubr.f32.mxu0 0.0
      %585 = vmatmul.mubr.f32.gmra.mxu0 %v499
      %v586 = vpop.f32.mrf.mxu0
      %v587 = vadd.f32 %v519, %v586
      %v588 = vpop.f32.mrf.mxu0
      %589 = vdwg.mxu0
      %590 = vst [vmem:[%s307] sm:$0xff] %v587
      %p591 = scmp.lt.s32.totalorder %s20, 1
      %s592 = scalar_select %p591, %s20, 1
      %p593 = scmp.lt.s32.totalorder %s21, 0
      %s594 = scalar_select %p593, %s21, 0
      %s595 = sadd.s32 %s594, %s592
      %s596 = smul.addr %s595, 8
      %s597 = scalar_lea.vmem %s5, %s596
      // Predicated region
      $region41: #{skeleton_emb.1} parent=39 // pred_check
        %p598 = pneg %p175
      $region42: #{skeleton_emb.1} parent=39 // pred_check_branch
        %600 = sbr.rel (%p598) target = $region44
      $region43: #{skeleton_emb.1} parent=39 // pred_region
        _
      $region44: #{skeleton_emb.1} parent=39 // pred_fallthru
        _
    $region40: #{skeleton_emb.1} parent=5 // pred_fallthru
      _
    %p601 = scmp.le.s32.totalorder 2, %s11
    // Predicated region
    $region45: #{skeleton_emb.1} parent=5 // pred_check
      %p602 = pneg %p601
    $region46: #{skeleton_emb.1} parent=5 // pred_check_branch
      %604 = sbr.rel (%p602) target = $region48
    $region47: #{skeleton_emb.1} parent=5 // pred_region
      %s605 = ssub.s32 %s11, 2
      // Predicated region
      $region49: #{skeleton_emb.1} parent=47 // pred_check
        %p606 = pneg %p181
      $region50: #{skeleton_emb.1} parent=47 // pred_check_branch
        %608 = sbr.rel (%p606) target = $region52
      $region51: #{skeleton_emb.1} parent=47 // pred_region
        %p609 = scmp.lt.s32.totalorder %s22, 1
        %s610 = scalar_select %p609, %s22, 1
        %p611 = scmp.lt.s32.totalorder %s23, 0
        %s612 = scalar_select %p611, %s23, 0
        %s613 = sadd.s32 %s612, %s610
        %s614 = smul.addr %s613, 8
        %s615 = scalar_lea.vmem %s5, %s614
      $region52: #{skeleton_emb.1} parent=47 // pred_fallthru
        _
    $region48: #{skeleton_emb.1} parent=5 // pred_fallthru
      _
  $region6: #{skeleton_emb.1} parent=0 // loop_footer
    %s15 = sadd.s32 1, %s11
  $region7: #{skeleton_emb.1} parent=0 // loop_footer_branch
    %10 = sbr.rel target = $region3
  $region8: #{skeleton_emb.1} parent=0 // loop_exit
    _

</llo_original>
